<compile_context>
chip_gen: v6e
topology: v6e:2x2x1
jax: 0.10.0
libtpu: 0.0.40
codegen_flags: <defaults>
</compile_context>

<pallas_src>
import math
import functools

import jax
import jax.numpy as jnp
import numpy as np
from jax.experimental import pallas as pl
from jax.experimental.pallas import tpu as pltpu

BN_EPS = 1e-5


# ----------------------------- kernels --------------------------------------

def adj_norm_kernel(adj_ref, o_ref):
    """A_hat = D^{-1/2}(A + I)D^{-1/2} for a batch tile of graphs."""
    A = adj_ref[...]                                  # (tb, N, N)
    _, N, _ = A.shape
    row = jax.lax.broadcasted_iota(jnp.int32, (N, N), 0)
    col = jax.lax.broadcasted_iota(jnp.int32, (N, N), 1)
    eye = (row == col).astype(A.dtype)
    A = A + eye[None]
    deg = jnp.sum(A, axis=-1)                         # (tb, N)
    dinv = jnp.where(deg > 0, jax.lax.rsqrt(deg), 0.0)
    o_ref[...] = (A * dinv[:, :, None] * dinv[:, None, :]).astype(o_ref.dtype)


def fused_gcn_kernel(x_ref, w_in_ref, b_in_ref, a_ref,
                     w_ref, b_ref, g_ref, be_ref, res_ref,
                     w_dec_ref, b_dec_ref,
                     o_ref, h_scr,
                     *, n_nodes, sqrt_hidden, logit_clipping):
    """One grid step == one GCN layer.  h_scr carries the hidden state."""
    l = pl.program_id(0)
    n_layers = pl.num_programs(0)

    # ---- in-projection (only at layer 0): one (B*N, F) x (F, H) matmul ----
    @pl.when(l == 0)
    def _():
        h_scr[...] = (jnp.dot(x_ref[...], w_in_ref[...],
                              preferred_element_type=jnp.float32)
                      + b_in_ref[...])

    h = h_scr[...]                                    # (B*N, H)
    bn_rows, H = h.shape
    Bp = bn_rows // n_nodes

    # ---- per-node linear, flattened to a single big MXU matmul ----
    h_lin = (jnp.dot(h, w_ref[0], preferred_element_type=jnp.float32)
             + b_ref[0])                              # (B*N, H)

    # ---- message passing: batched A_hat @ h_lin ----
    h_lin3 = h_lin.reshape(Bp, n_nodes, H)
    msg = jax.lax.dot_general(
        a_ref[...], h_lin3,
        dimension_numbers=(((2,), (1,)), ((0,), (0,))),
        preferred_element_type=jnp.float32)           # (Bp, N, H)
    out = msg.reshape(bn_rows, H)

    # ---- BatchNorm1d: training-mode batch stats over ALL B*N rows ----
    mu = jnp.mean(out, axis=0, keepdims=True)         # (1, H)
    var = jnp.mean(jnp.square(out - mu), axis=0, keepdims=True)
    out = (out - mu) * jax.lax.rsqrt(var + BN_EPS)
    out = g_ref[0] * out + be_ref[0]

    # ---- ReLU + residual ----
    out = jnp.maximum(out, 0.0) + res_ref[l] * h
    h_scr[...] = out

    # ---- decoder epilogue at the last layer ----
    @pl.when(l == n_layers - 1)
    def _():
        logits = (jnp.dot(out, w_dec_ref[...],
                          preferred_element_type=jnp.float32)
                  + b_dec_ref[...]) / sqrt_hidden
        o_ref[...] = (logit_clipping * jnp.tanh(logits)).astype(o_ref.dtype)


# ----------------------------- wrappers -------------------------------------

def _pick_batch_tile(Bp, N, budget_bytes=4 << 20):
    """Largest divisor of Bp that fits the VMEM budget; prefer >=2 grid steps."""
    per_graph = max(1, N * N * 4)
    cap = max(1, budget_bytes // per_graph)
    best = 1
    for d in range(1, Bp + 1):
        if Bp % d == 0 and d <= cap and (Bp // d >= 2 or Bp == 1):
            best = d
    return best


def normalize_adjacency_pallas(adj):
    Bp, N, _ = adj.shape
    tb = _pick_batch_tile(Bp, N)
    grid = (Bp // tb,)
    flops = int(4 * Bp * N * N)
    bytes_acc = int(8 * Bp * N * N)
    vmem_limit = int(min(max(4 * tb * N * N * 4 + (8 << 20), 32 << 20), 64 << 20))
    return pl.pallas_call(
        adj_norm_kernel,
        out_shape=jax.ShapeDtypeStruct((Bp, N, N), jnp.float32),
        grid=grid,
        in_specs=[pl.BlockSpec((tb, N, N), lambda b: (b, 0, 0))],
        out_specs=pl.BlockSpec((tb, N, N), lambda b: (b, 0, 0)),
        compiler_params=pltpu.CompilerParams(
            dimension_semantics=("parallel",),
            vmem_limit_bytes=vmem_limit),
        cost_estimate=pl.CostEstimate(flops=flops, transcendentals=int(Bp * N),
                                      bytes_accessed=bytes_acc),
    )(adj)


def run_fused_gcn(x2d, a_hat, params, *, n_nodes, sqrt_hidden, logit_clipping):
    bn_rows, F = x2d.shape
    Bp, N, _ = a_hat.shape
    H = params["w_in"].shape[1]
    L = params["w_stack"].shape[0]
    O = params["w_dec"].shape[1]

    kern = functools.partial(fused_gcn_kernel, n_nodes=n_nodes,
                             sqrt_hidden=sqrt_hidden,
                             logit_clipping=logit_clipping)

    flops = int(L * (2 * bn_rows * H * H + 2 * Bp * N * N * H
                     + 10 * bn_rows * H)
                + 2 * bn_rows * F * H + 2 * bn_rows * H * O)
    transcendentals = int(L * H + bn_rows * O)
    bytes_acc = int(4 * (bn_rows * F + F * H + H + Bp * N * N
                         + L * (H * H + 3 * H) + L + H * O + O + bn_rows * O))
    vmem_est = 4 * (bn_rows * F + F * H + Bp * N * N
                    + 4 * (H * H + 3 * H)          # double-buffered layer weights
                    + H * O + bn_rows * O + bn_rows * H) + (8 << 20)
    vmem_limit = int(min(max(vmem_est, 32 << 20), 64 << 20))

    return pl.pallas_call(
        kern,
        out_shape=jax.ShapeDtypeStruct((bn_rows, O), jnp.float32),
        grid=(L,),
        in_specs=[
            pl.BlockSpec((bn_rows, F), lambda l: (0, 0)),        # x (flattened)
            pl.BlockSpec((F, H), lambda l: (0, 0)),              # w_in
            pl.BlockSpec((1, H), lambda l: (0, 0)),              # b_in
            pl.BlockSpec((Bp, N, N), lambda l: (0, 0, 0)),       # A_hat (resident)
            pl.BlockSpec((1, H, H), lambda l: (l, 0, 0)),        # w_stack[l]
            pl.BlockSpec((1, 1, H), lambda l: (l, 0, 0)),        # b_stack[l]
            pl.BlockSpec((1, 1, H), lambda l: (l, 0, 0)),        # gamma_stack[l]
            pl.BlockSpec((1, 1, H), lambda l: (l, 0, 0)),        # beta_stack[l]
            pl.BlockSpec(memory_space=pltpu.MemorySpace.SMEM),   # res_weights (L,)
            pl.BlockSpec((H, O), lambda l: (0, 0)),              # w_dec
            pl.BlockSpec((1, O), lambda l: (0, 0)),              # b_dec
        ],
        out_specs=pl.BlockSpec((bn_rows, O), lambda l: (0, 0)),
        scratch_shapes=[pltpu.VMEM((bn_rows, H), jnp.float32)],  # carried h
        compiler_params=pltpu.CompilerParams(
            dimension_semantics=("arbitrary",),
            vmem_limit_bytes=vmem_limit),
        cost_estimate=pl.CostEstimate(flops=flops,
                                      transcendentals=transcendentals,
                                      bytes_accessed=bytes_acc),
    )(x2d, params["w_in"], params["b_in"], a_hat,
      params["w_stack"], params["b_stack"], params["gamma_stack"],
      params["beta_stack"], params["res_weights"],
      params["w_dec"], params["b_dec"])


def gcn_model_forward(node_features, adj, params, *, hidden_dim,
                      logit_clipping=10.0):
    """node_features: (batch, pomo, N, F); adj: (batch*pomo, N, N)."""
    b, p, N, F = node_features.shape
    Bp = b * p
    x2d = node_features.reshape(Bp * N, F)
    a_hat = normalize_adjacency_pallas(adj)
    logits2d = run_fused_gcn(x2d, a_hat, params, n_nodes=N,
                             sqrt_hidden=math.sqrt(hidden_dim),
                             logit_clipping=logit_clipping)
    O = params["w_dec"].shape[1]
    return logits2d.reshape(Bp, N, O)


# ----------------------- pure-JAX reference (sanity) ------------------------

def reference_forward(node_features, adj, params, *, hidden_dim,
                      logit_clipping=10.0):
    b, p, N, F = node_features.shape
    Bp = b * p
    x = node_features.reshape(Bp, N, F)

    eye = jnp.eye(N, dtype=adj.dtype)
    A = adj + eye[None]
    deg = A.sum(-1)
    dinv = jnp.where(deg > 0, deg ** -0.5, 0.0)
    A_hat = A * dinv[:, :, None] * dinv[:, None, :]

    h = jnp.einsum("bnf,fh->bnh", x, params["w_in"],
                   precision="highest") + params["b_in"][None]
    L = params["w_stack"].shape[0]
    for l in range(L):
        h_lin = jnp.einsum("bnh,hk->bnk", h, params["w_stack"][l],
                           precision="highest") + params["b_stack"][l][None]
        out = jnp.einsum("bnm,bmh->bnh", A_hat, h_lin, precision="highest")
        out2 = out.reshape(Bp * N, hidden_dim)
        mu = out2.mean(axis=0, keepdims=True)
        var = ((out2 - mu) ** 2).mean(axis=0, keepdims=True)
        out2 = params["gamma_stack"][l] * (out2 - mu) / jnp.sqrt(var + BN_EPS) \
            + params["beta_stack"][l]
        out = jnp.maximum(out2.reshape(Bp, N, hidden_dim), 0.0)
        h = out + params["res_weights"][l] * h

    logits = jnp.einsum("bnh,ho->bno", h, params["w_dec"],
                        precision="highest") + params["b_dec"][None]
    logits = logits / math.sqrt(hidden_dim)
    return logit_clipping * jnp.tanh(logits)


# ----------------------------- param init -----------------------------------

def xavier_uniform(key, fan_in, fan_out):
    bound = math.sqrt(6.0 / (fan_in + fan_out))
    return jax.random.uniform(key, (fan_in, fan_out), jnp.float32,
                              -bound, bound)


def init_params(key, node_in_dim, hidden_dim, n_layers, node_out_dim):
    keys = jax.random.split(key, n_layers + 2)
    w_stack = jnp.stack([xavier_uniform(keys[2 + i], hidden_dim, hidden_dim)
                         for i in range(n_layers)])
    return {
        "w_in": xavier_uniform(keys[0], node_in_dim, hidden_dim),
        "b_in": jnp.zeros((1, hidden_dim), jnp.float32),
        "w_dec": xavier_uniform(keys[1], hidden_dim, node_out_dim),
        "b_dec": jnp.zeros((1, node_out_dim), jnp.float32),
        "w_stack": w_stack,
        "b_stack": jnp.zeros((n_layers, 1, hidden_dim), jnp.float32),
        "gamma_stack": jnp.ones((n_layers, 1, hidden_dim), jnp.float32),
        "beta_stack": jnp.zeros((n_layers, 1, hidden_dim), jnp.float32),
        "res_weights": jnp.zeros((n_layers,), jnp.float32),   # init 0.0
    }


# --------------------------------- main --------------------------------------

if __name__ == "__main__":
    batch_size, pomo_size = 2, 1
    N = 8              # problem_size (nodes)
    node_in_dim = 4
    hidden_dim = 128   # module default; lane-dense on TPU
    n_layers = 3
    node_out_dim = 1

    key = jax.random.PRNGKey(0)
    k_feat, k_adj, k_par = jax.random.split(key, 3)

    node_features = jax.random.normal(
        k_feat, (batch_size, pomo_size, N, node_in_dim), jnp.float32)

    raw = jax.random.bernoulli(k_adj, 0.4, (batch_size * pomo_size, N, N))
    adj = jnp.maximum(raw, jnp.swapaxes(raw, 1, 2)).astype(jnp.float32)
    adj = adj * (1.0 - jnp.eye(N, dtype=jnp.float32)[None])  # no self loops

    params = init_params(k_par, node_in_dim, hidden_dim, n_layers,
                         node_out_dim)

    out = gcn_model_forward(node_features, adj, params, hidden_dim=hidden_dim,
                            logit_clipping=10.0)
    out = jax.block_until_ready(out)

    ref = reference_forward(node_features, adj, params, hidden_dim=hidden_dim,
                            logit_clipping=10.0)
    np.testing.assert_allclose(np.asarray(out), np.asarray(ref),
                               rtol=1e-2, atol=1e-2)

    print("KERNEL_OK")
</pallas_src>

<mosaic_0001>
module attributes {stable_mosaic.version = 11 : i64} {
  func.func @adj_norm_kernel(%arg0: i32, %arg1: memref<1x8x8xf32, #tpu.memory_space<vmem>>, %arg2: memref<1x8x8xf32, #tpu.memory_space<vmem>>) attributes {dimension_semantics = [#tpu.dimension_semantics<parallel>], iteration_bounds = array<i64: 2>, scalar_prefetch = 0 : i64, scratch_operands = 0 : i64, tpu.core_type = #tpu.core_type<tc>, window_params = [{transform_indices = @transform_0, window_bounds = array<i64: 1, 8, 8>}, {transform_indices = @transform_1, window_bounds = array<i64: 1, 8, 8>}]} {
    %c0 = arith.constant 0 : index
    %c0_0 = arith.constant 0 : index
    %c0_1 = arith.constant 0 : index
    %0 = vector.load %arg1[%c0, %c0_0, %c0_1] : memref<1x8x8xf32, #tpu.memory_space<vmem>>, vector<1x8x8xf32>
    %1 = tpu.iota {dimensions = array<i32: 0>} : vector<8x8xi32>
    %2 = tpu.iota {dimensions = array<i32: 1>} : vector<8x8xi32>
    %3 = arith.cmpi eq, %1, %2 : vector<8x8xi32>
    %4 = arith.extui %3 : vector<8x8xi1> to vector<8x8xi32>
    %5 = arith.sitofp %4 : vector<8x8xi32> to vector<8x8xf32>
    %6 = vector.shape_cast %5 : vector<8x8xf32> to vector<1x8x8xf32>
    %7 = arith.addf %0, %6 : vector<1x8x8xf32>
    %cst = arith.constant dense<0.000000e+00> : vector<1x8xf32>
    %8 = vector.multi_reduction <add>, %7, %cst [2] : vector<1x8x8xf32> to vector<1x8xf32>
    %cst_2 = arith.constant 0.000000e+00 : f32
    %9 = vector.broadcast %cst_2 : f32 to vector<1x8xf32>
    %10 = arith.cmpf ogt, %8, %9 : vector<1x8xf32>
    %11 = math.rsqrt %8 : vector<1x8xf32>
    %cst_3 = arith.constant 0.000000e+00 : f32
    %12 = vector.broadcast %cst_3 : f32 to vector<1x8xf32>
    %13 = arith.select %10, %11, %12 : vector<1x8xi1>, vector<1x8xf32>
    %14 = vector.shape_cast %13 : vector<1x8xf32> to vector<1x8x1xf32>
    %15 = vector.broadcast %14 : vector<1x8x1xf32> to vector<1x8x8xf32>
    %16 = arith.mulf %7, %15 : vector<1x8x8xf32>
    %17 = vector.shape_cast %13 : vector<1x8xf32> to vector<1x1x8xf32>
    %18 = vector.broadcast %17 : vector<1x1x8xf32> to vector<1x8x8xf32>
    %19 = arith.mulf %16, %18 : vector<1x8x8xf32>
    %c0_4 = arith.constant 0 : index
    %c0_5 = arith.constant 0 : index
    %c0_6 = arith.constant 0 : index
    %20 = vector.load %arg2[%c0_4, %c0_5, %c0_6] : memref<1x8x8xf32, #tpu.memory_space<vmem>>, vector<1x8x8xf32>
    tpu.vector_store %arg2[%c0_4, %c0_5, %c0_6], %19 {strides = array<i32>} : memref<1x8x8xf32, #tpu.memory_space<vmem>>, vector<1x8x8xf32>,
    return
  }
  func.func @transform_0(%arg0: i32) -> (i32, i32, i32) {
    %c0_i32 = arith.constant 0 : i32
    %c0_i32_0 = arith.constant 0 : i32
    %c0_i32_1 = arith.constant 0 : i32
    return %arg0, %c0_i32, %c0_i32_0 : i32, i32, i32
  }
  func.func @transform_1(%arg0: i32) -> (i32, i32, i32) {
    %c0_i32 = arith.constant 0 : i32
    %c0_i32_0 = arith.constant 0 : i32
    %c0_i32_1 = arith.constant 0 : i32
    return %arg0, %c0_i32, %c0_i32_0 : i32, i32, i32
  }
}

</mosaic_0001>

<llo_original>
// kernel: tpu_custom_call.1
$region0: #{tpu_custom_call.1}
  #allocation0 [shape = 'u32[]', space=smem, size = 0x4, offset = 0x4, fixed_abs, tag = 'smem constant byte address 0x4 - core index']
  #allocation1 [shape = 'u32[144,128]{1,0:T(1,128)}', space=vmem, size = 0x12000, scoped, tag = 'internal scratch']
  %s0 = inlined_call_operand.hbm [shape: f32[2,8,8], index: 0, kind: input, shape index: {}]
  %s1 = inlined_call_operand.hbm [shape: f32[2,8,8], index: 1, kind: output, shape index: {}]
  %s2 = sld [smem:[#allocation0]]
  $region41: #{tpu_custom_call.1} parent=0
    _
  %s4 = ssub.s32 1, %s2
  %s5 = scalar_select 0, %s4, %s2
  $region1: #{tpu_custom_call.1} parent=0
    #allocation2 [shape = 'u8[8192]{0}', space=vmem, size = 0x2000, scoped, tag = 'input window, operand 0']
    #allocation3 [shape = 's32[2]{0}', space=sflag, size = 0x8, scoped, tag = 'scoped memory for tpu_custom_call.1']
    #allocation4 [shape = 's32[2]{0}', space=sflag, size = 0x8, scoped, tag = 'scoped memory for tpu_custom_call.1']
    #allocation5 [shape = 'u8[8192]{0}', space=vmem, size = 0x2000, scoped, tag = 'output window, operand 0']
    %6 = vsyncpa [#allocation3], 0
    %s7 = scalar_lea.sflag [#allocation3], 1
    %8 = vsyncpa %s7, 0
    %9 = vsyncpa [#allocation4], 0
    %s10 = scalar_lea.sflag [#allocation4], 1
    %11 = vsyncpa %s10, 0
    loop: start=0, step=1, limit=4
    $region2: #{tpu_custom_call.1} parent=1 // loop_pre_header
      _
    $region3: #{tpu_custom_call.1} parent=1 // loop_header
      %s13 = sphi 0, %s17
      %p14 = scmp.ge.s32.totalorder %s13, 4
      %s23 = sphi 0, %s25
      %s26 = sphi 0, %s23
      %s27 = sphi 0, %s26
      %s43 = sphi 0, %s27
      %s49 = sphi 0, %s51
      %s52 = sphi 0, %s49
      %s53 = sphi 0, %s52
      %s69 = sphi 0, %s53
    $region4: #{tpu_custom_call.1} parent=1 // loop_header_branch
      %16 = sbr.rel (%p14) target = $region8
    $region5: #{tpu_custom_call.1} parent=1 // loop_body
      %s18 = ssub.s32 %s13, 1
      %s19 = ssub.s32 %s13, 2
      %s20 = sadd.s32 %s13, 1
      %s21 = ssub.s32 %s13, %s20
      %p22 = scmp.eq.s32.totalorder %s21, 0
      %s24 = sadd.s32 %s23, 1
      %s25 = scalar_select %p22, %s23, %s24
      %p28 = pneg %p22
      %p29 = scmp.eq.s32.totalorder %s13, 1
      %p30 = por %p28, %p29
      %p31 = scmp.ne.s32.totalorder %s23, %s26
      %p32 = scmp.eq.s32.totalorder %s13, 0
      %p33 = por %p31, %p32
      %p34 = scmp.ne.s32.totalorder %s23, %s26
      %p35 = scmp.eq.s32.totalorder %s18, 1
      %p36 = por %p34, %p35
      %p37 = scmp.ne.s32.totalorder %s26, %s27
      %p38 = scmp.eq.s32.totalorder %s18, 0
      %p39 = por %p37, %p38
      %p40 = scmp.ne.s32.totalorder %s26, %s27
      %p41 = scmp.eq.s32.totalorder %s19, 1
      %p42 = por %p40, %p41
      %p44 = scmp.ne.s32.totalorder %s27, %s43
      %p45 = scmp.eq.s32.totalorder %s19, 0
      %p46 = por %p44, %p45
      %s47 = ssub.s32 %s13, %s20
      %p48 = scmp.eq.s32.totalorder %s47, 0
      %s50 = sadd.s32 %s49, 1
      %s51 = scalar_select %p48, %s49, %s50
      %p54 = pneg %p48
      %p55 = scmp.eq.s32.totalorder %s13, 1
      %p56 = por %p54, %p55
      %p57 = scmp.ne.s32.totalorder %s49, %s52
      %p58 = scmp.eq.s32.totalorder %s13, 0
      %p59 = por %p57, %p58
      %p60 = scmp.ne.s32.totalorder %s49, %s52
      %p61 = scmp.eq.s32.totalorder %s18, 1
      %p62 = por %p60, %p61
      %p63 = scmp.ne.s32.totalorder %s52, %s53
      %p64 = scmp.eq.s32.totalorder %s18, 0
      %p65 = por %p63, %p64
      %p66 = scmp.ne.s32.totalorder %s52, %s53
      %p67 = scmp.eq.s32.totalorder %s19, 1
      %p68 = por %p66, %p67
      %p70 = scmp.ne.s32.totalorder %s53, %s69
      %p71 = scmp.eq.s32.totalorder %s19, 0
      %p72 = por %p70, %p71
      %p73 = scmp.le.s32.totalorder 1, %s13
      %p74 = scmp.lt.s32.totalorder %s13, 3
      %p75 = pnand %p73, %p74
      %p76 = pneg %p75
      // Predicated region
      $region9: #{tpu_custom_call.1} parent=5 // pred_check
        _
      $region10: #{tpu_custom_call.1} parent=5 // pred_check_branch
        %78 = sbr.rel (%p75) target = $region12
      $region11: #{tpu_custom_call.1} parent=5 // pred_region
        %s79 = ssub.s32 %s13, 1
      $region12: #{tpu_custom_call.1} parent=5 // pred_fallthru
        _
      %p80 = scmp.lt.s32.totalorder %s13, 2
      // Predicated region
      $region13: #{tpu_custom_call.1} parent=5 // pred_check
        %p81 = pneg %p80
      $region14: #{tpu_custom_call.1} parent=5 // pred_check_branch
        %83 = sbr.rel (%p81) target = $region16
      $region15: #{tpu_custom_call.1} parent=5 // pred_region
        // Predicated region
        $region17: #{tpu_custom_call.1} parent=15 // pred_check
          %p84 = pneg %p33
        $region18: #{tpu_custom_call.1} parent=15 // pred_check_branch
          %86 = sbr.rel (%p84) target = $region20
        $region19: #{tpu_custom_call.1} parent=15 // pred_region
          %s87 = sand.u32 %s23, 1
          %s88 = scalar_lea.sflag [#allocation3], %s87
          %s89 = sand.u32 %s23, 1
          %s90 = smul.addr %s89, 8
          %s91 = scalar_lea.vmem [#allocation2], %s90
          %s93 = ssub.s32 128, 128
          %94 = vsyncadd %s88, %s93
          %s95 = smul.addr %s13, 128
          %s96 = scalar_lea.hbm %s0, %s95
          %s98 = sshll.u32 %s91, 4
          %s99 = int_to_ptr.vmem [resolvable:$true] %s98
          %101 = dma.hbm_to_vmem [thread:$0]  %s96, 128, %s99, %s88
        $region20: #{tpu_custom_call.1} parent=15 // pred_fallthru
          _
      $region16: #{tpu_custom_call.1} parent=5 // pred_fallthru
        _
      %p102 = scmp.le.s32.totalorder 1, %s13
      %p103 = scmp.lt.s32.totalorder %s13, 3
      %p104 = pnand %p102, %p103
      %p105 = pneg %p104
      // Predicated region
      $region21: #{tpu_custom_call.1} parent=5 // pred_check
        _
      $region22: #{tpu_custom_call.1} parent=5 // pred_check_branch
        %107 = sbr.rel (%p104) target = $region24
      $region23: #{tpu_custom_call.1} parent=5 // pred_region
        %s108 = ssub.s32 %s13, 1
        %s109 = sand.u32 %s26, 1
        %s110 = scalar_lea.sflag [#allocation3], %s109
        %s111 = sand.u32 %s26, 1
        %s112 = smul.addr %s111, 8
        %s113 = scalar_lea.vmem [#allocation2], %s112
        // Predicated region
        $region25: #{tpu_custom_call.1} parent=23 // pred_check
          %p114 = pneg %p39
        $region26: #{tpu_custom_call.1} parent=23 // pred_check_branch
          %116 = sbr.rel (%p114) target = $region28
        $region27: #{tpu_custom_call.1} parent=23 // pred_region
          %117 = dma.done %s110, 128
        $region28: #{tpu_custom_call.1} parent=23 // pred_fallthru
          _
        %s118 = sand.u32 %s26, 1
        %s119 = scalar_lea.sflag [#allocation3], %s118
        %s120 = sand.u32 %s26, 1
        %s121 = smul.addr %s120, 8
        %s122 = scalar_lea.vmem [#allocation2], %s121
        %p123 = pneg %p39
        %p124 = pneg %p36
        %p125 = pneg %p65
        %p126 = pneg %p62
        %s127 = sand.u32 %s52, 1
        %s128 = scalar_lea.sflag [#allocation4], %s127
        %s129 = sand.u32 %s52, 1
        %s130 = smul.addr %s129, 8
        %s131 = scalar_lea.vmem [#allocation5], %s130
        %v132 = vld [vmem:[%s113] sm:$0xff]
        %v133 = vlaneseq
        %v134 = vshrl.u32 %v133, 7
        %v135 = vlaneseq
        %v136 = vand.u32 %v135, 127
        %vm137 = vcmp.eq.s32.totalorder %v134, %v136
        %v138 = vsel %vm137, 1, 0
        %v139 = vcvt.s32.f32 %v138
        %v140 = vadd.f32 %v132, %v139
        %vm141 = vcmask 64512
        %v142 = vsel %vm141, %v140, 0.0
        %143 = vadd.xlane.f32.xlu0 %v142
        %v144 = vpop.xlane.xlu0 %143
        %vm145 = vcmp.gt.f32.partialorder %v144, 0.0
        %v146 = vrsqrt.pop %v144
        %v147 = vsel %vm145, %v146, 0.0
        %v148 = vmul.f32 %v140, %v147
        %v150 = vlaneseq
        %v151 = vshrl.u32 %v150, 7
        %v152 = vsub.s32 %v136, %v151
        %v153 = vrot.slane %v147, %v152
        %vm154 = vcmask 1042434
        %v155 = vsel %vm154, %v153, %v153
        %vm156 = vcmask 1043459
        %v157 = vsel %vm156, %v153, %v155
        %vm158 = vcmask 1044484
        %v159 = vsel %vm158, %v153, %v157
        %vm160 = vcmask 1045509
        %v161 = vsel %vm160, %v153, %v159
        %vm162 = vcmask 1046534
        %v163 = vsel %vm162, %v153, %v161
        %vm164 = vcmask 1047559
        %v165 = vsel %vm164, %v153, %v163
        %v167 = vmul.f32 %v148, %v165
        %168 = vst.msk [vmem:[%s131] sm:$0xff] %vm141, %v167
        %s169 = sand.u32 %s52, 1
        %s170 = scalar_lea.sflag [#allocation4], %s169
        %s171 = sand.u32 %s52, 1
        %s172 = smul.addr %s171, 8
        %s173 = scalar_lea.vmem [#allocation5], %s172
        // Predicated region
        $region29: #{tpu_custom_call.1} parent=23 // pred_check
          %p174 = pneg %p62
        $region30: #{tpu_custom_call.1} parent=23 // pred_check_branch
          %176 = sbr.rel (%p174) target = $region32
        $region31: #{tpu_custom_call.1} parent=23 // pred_region
          %s178 = ssub.s32 128, 128
          %179 = vsyncadd %s170, %s178
          %s180 = smul.addr %s18, 128
          %s181 = scalar_lea.hbm %s1, %s180
          %s183 = sshll.u32 %s173, 4
          %s184 = int_to_ptr.vmem [resolvable:$true] %s183
          %186 = dma.vmem_to_hbm [thread:$0]  %s184, 128, %s181, %s170
        $region32: #{tpu_custom_call.1} parent=23 // pred_fallthru
          _
      $region24: #{tpu_custom_call.1} parent=5 // pred_fallthru
        _
      %p187 = scmp.le.s32.totalorder 2, %s13
      // Predicated region
      $region33: #{tpu_custom_call.1} parent=5 // pred_check
        %p188 = pneg %p187
      $region34: #{tpu_custom_call.1} parent=5 // pred_check_branch
        %190 = sbr.rel (%p188) target = $region36
      $region35: #{tpu_custom_call.1} parent=5 // pred_region
        %s191 = ssub.s32 %s13, 2
        // Predicated region
        $region37: #{tpu_custom_call.1} parent=35 // pred_check
          %p192 = pneg %p68
        $region38: #{tpu_custom_call.1} parent=35 // pred_check_branch
          %194 = sbr.rel (%p192) target = $region40
        $region39: #{tpu_custom_call.1} parent=35 // pred_region
          %s195 = sand.u32 %s53, 1
          %s196 = scalar_lea.sflag [#allocation4], %s195
          %s197 = sand.u32 %s53, 1
          %s198 = smul.addr %s197, 8
          %s199 = scalar_lea.vmem [#allocation5], %s198
          %200 = dma.done %s196, 128
        $region40: #{tpu_custom_call.1} parent=35 // pred_fallthru
          _
      $region36: #{tpu_custom_call.1} parent=5 // pred_fallthru
        _
    $region6: #{tpu_custom_call.1} parent=1 // loop_footer
      %s17 = sadd.s32 1, %s13
    $region7: #{tpu_custom_call.1} parent=1 // loop_footer_branch
      %12 = sbr.rel target = $region3
    $region8: #{tpu_custom_call.1} parent=1 // loop_exit
      _
    %201 = vsyncpa [#allocation3], 1
    %s202 = scalar_lea.sflag [#allocation3], 1
    %203 = vsyncpa %s202, 1
    %204 = vsyncpa [#allocation4], 1
    %s205 = scalar_lea.sflag [#allocation4], 1
    %206 = vsyncpa %s205, 1

</llo_original>
